<compile_context>
chip_gen: v5e
topology: v5e:2x2
jax: 0.10.0
libtpu: 0.0.40
codegen_flags: <defaults>
</compile_context>

<pallas_src>
import functools

import jax
import jax.numpy as jnp
from jax.experimental import pallas as pl
from jax.experimental.pallas import tpu as pltpu


def cnn_kernel(tok_ref, tab_ref, w01_ref, bc_ref, wd_ref, bd_ref, out_ref, *,
               seq_len, hidden, n_rows):
    """Fused CNN forward.

    tok_ref : (R, 1)  int32   flattened padded tokens, R = Bp*T
    tab_ref : (Vp, E) f32     embedding table (vocab padded to sublane mult.)
    w01_ref : (E, 2H) f32     conv taps merged: cols [:H]=tap0, [H:]=tap1
    bc_ref  : (1, H)  f32     conv bias
    wd_ref  : (H, Cp) f32     decision weight (lane-padded)
    bd_ref  : (1, Cp) f32     decision bias   (lane-padded)
    out_ref : (Bp, Cp) f32    logits (lane-dense store)
    """
    T = seq_len
    H = hidden
    R = n_rows
    Bp = R // T
    Vp = tab_ref.shape[0]

    # ---- in-kernel embedding gather as a one-hot MXU matmul --------------
    tok = tok_ref[...]                                             # (R, 1)
    vocab_ids = jax.lax.broadcasted_iota(jnp.int32, (R, Vp), 1)    # (R, Vp)
    onehot = (vocab_ids == tok).astype(jnp.float32)                # (R, Vp)
    emb = jnp.dot(onehot, tab_ref[...],
                  preferred_element_type=jnp.float32)              # (R, E)

    # ---- single merged conv matmul over both taps -------------------------
    g = jnp.dot(emb, w01_ref[...],
                preferred_element_type=jnp.float32)                # (R, 2H)
    g0 = g[:, :H]                                                  # tap 0
    g1 = g[:, H:]                                                  # tap 1

    # conv[b, t] = g0[b, t] + g1[b, t+1] + bias : bring row t+1 of the tap-1
    # projection down to row t with a sublane shift (last row is garbage and
    # gets masked below).
    g1_shift = jnp.concatenate(
        [g1[1:, :], jnp.zeros((1, H), jnp.float32)], axis=0)       # (R, H)
    act = jnp.maximum(g0 + g1_shift + bc_ref[...], 0.0)            # ReLU

    # ---- per-sequence global max-pool over time ---------------------------
    act3 = act.reshape(Bp, T, H)
    t_ids = jax.lax.broadcasted_iota(jnp.int32, (Bp, T, H), 1)
    # Row t == T-1 is the cross-sequence/wrap row (conv is 'valid', length
    # T-1).  ReLU output is >= 0 and each sequence has >= 1 valid row, so 0 is
    # a neutral element for the max.
    act3 = jnp.where(t_ids != (T - 1), act3, 0.0)
    pooled = jnp.max(act3, axis=1)                                 # (Bp, H)

    # ---- decision head (lane-dense output store) ---------------------------
    out_ref[...] = (jnp.dot(pooled, wd_ref[...],
                            preferred_element_type=jnp.float32)
                    + bd_ref[...])


def _cnn_forward(tokens, params):
    embed_tab, w_conv, b_conv, w_dec, b_dec = params
    B, T = tokens.shape
    V, E = embed_tab.shape
    H = w_conv.shape[0]
    C = w_dec.shape[0]

    b_pad = ((B + 7) // 8) * 8          # pad batch to 8 sublanes
    R = b_pad * T
    v_pad = ((V + 7) // 8) * 8          # pad vocab to 8 sublanes
    c_pad = ((C + 127) // 128) * 128    # lane-dense decision output

    tok_flat = jnp.pad(tokens.astype(jnp.int32),
                       ((0, b_pad - B), (0, 0))).reshape(R, 1)
    tab = jnp.pad(embed_tab.astype(jnp.float32), ((0, v_pad - V), (0, 0)))
    # Conv1d taps merged and pre-transposed for x @ W : (E, 2H).
    w01 = jnp.concatenate(
        [jnp.transpose(w_conv[:, :, 0]), jnp.transpose(w_conv[:, :, 1])],
        axis=1).astype(jnp.float32)
    bc = b_conv.reshape(1, H).astype(jnp.float32)
    wd = jnp.pad(jnp.transpose(w_dec).astype(jnp.float32),
                 ((0, 0), (0, c_pad - C)))                         # (H, Cp)
    bd = jnp.pad(b_dec.reshape(1, C).astype(jnp.float32),
                 ((0, 0), (0, c_pad - C)))                         # (1, Cp)

    vmem = pl.BlockSpec(memory_space=pltpu.MemorySpace.VMEM)
    out = pl.pallas_call(
        functools.partial(cnn_kernel, seq_len=T, hidden=H, n_rows=R),
        out_shape=jax.ShapeDtypeStruct((b_pad, c_pad), jnp.float32),
        in_specs=[vmem] * 6,
        out_specs=vmem,
    )(tok_flat, tab, w01, bc, wd, bd)
    return out[:B, :C]


cnn_forward = jax.jit(_cnn_forward)


def cnn_reference(tokens, params):
    """Pure-JAX reference with the exact PyTorch CNN.forward semantics."""
    embed_tab, w_conv, b_conv, w_dec, b_dec = params
    emb = jnp.take(embed_tab, tokens, axis=0).astype(jnp.float32)   # (B, T, E)
    B, T, _ = emb.shape
    # Conv1d(E->H, kernel_size=2, valid):
    #   conv[b,h,t] = b[h] + sum_e W[h,e,0]*emb[b,t,e] + W[h,e,1]*emb[b,t+1,e]
    g0 = jnp.einsum('bte,he->bth', emb, w_conv[:, :, 0])
    g1 = jnp.einsum('bte,he->bth', emb, w_conv[:, :, 1])
    conv = g0[:, :T - 1, :] + g1[:, 1:, :] + b_conv[None, None, :]
    act = jax.nn.relu(conv)                      # (B, T-1, H)
    pooled = jnp.max(act, axis=1)                # global max-pool over time
    return pooled @ w_dec.T + b_dec[None, :]     # (B, C)


def make_params(key, vocab, embed_size, hidden_size, n_classes):
    ks = jax.random.split(key, 5)
    embed_tab = jax.random.normal(ks[0], (vocab, embed_size), jnp.float32)
    s_conv = 1.0 / jnp.sqrt(embed_size * 2)      # PyTorch Conv1d init scale
    w_conv = jax.random.uniform(ks[1], (hidden_size, embed_size, 2),
                                jnp.float32, -s_conv, s_conv)
    b_conv = jax.random.uniform(ks[2], (hidden_size,), jnp.float32,
                                -s_conv, s_conv)
    s_dec = 1.0 / jnp.sqrt(hidden_size)          # PyTorch Linear init scale
    w_dec = jax.random.uniform(ks[3], (n_classes, hidden_size), jnp.float32,
                               -s_dec, s_dec)
    b_dec = jax.random.uniform(ks[4], (n_classes,), jnp.float32,
                               -s_dec, s_dec)
    return (embed_tab, w_conv, b_conv, w_dec, b_dec)


if __name__ == "__main__":
    VOCAB = 50          # len(vocab_to_int)
    EMBED = 32          # embed_size
    HIDDEN = 32         # hidden_size
    N_CLASSES = 10      # len(hashtags_vocab_to_int)
    B, T = 2, 8

    key = jax.random.PRNGKey(0)
    k_tok, k_par = jax.random.split(key)
    tokens = jax.random.randint(k_tok, (B, T), 0, VOCAB, dtype=jnp.int32)
    params = make_params(k_par, VOCAB, EMBED, HIDDEN, N_CLASSES)

    out = cnn_forward(tokens, params)
    out = jax.block_until_ready(out)

    ref = cnn_reference(tokens, params)
    assert out.shape == (B, N_CLASSES)
    assert jnp.allclose(out, ref, atol=1e-4, rtol=1e-4), "kernel/reference mismatch"

    print("KERNEL_OK")
</pallas_src>

<mosaic_0001>
module attributes {stable_mosaic.version = 11 : i64} {
  func.func @cnn_kernel(%arg0: memref<64x1xi32, #tpu.memory_space<vmem>>, %arg1: memref<56x32xf32, #tpu.memory_space<vmem>>, %arg2: memref<32x64xf32, #tpu.memory_space<vmem>>, %arg3: memref<1x32xf32, #tpu.memory_space<vmem>>, %arg4: memref<32x128xf32, #tpu.memory_space<vmem>>, %arg5: memref<1x128xf32, #tpu.memory_space<vmem>>, %arg6: memref<8x128xf32, #tpu.memory_space<vmem>>) attributes {dimension_semantics = [], scalar_prefetch = 0 : i64, scratch_operands = 0 : i64, tpu.core_type = #tpu.core_type<tc>} {
    %c0 = arith.constant 0 : index
    %c0_0 = arith.constant 0 : index
    %0 = vector.load %arg0[%c0, %c0_0] : memref<64x1xi32, #tpu.memory_space<vmem>>, vector<64x1xi32>
    %1 = tpu.iota {dimensions = array<i32: 1>} : vector<64x56xi32>
    %2 = vector.broadcast %0 : vector<64x1xi32> to vector<64x56xi32>
    %3 = arith.cmpi eq, %1, %2 : vector<64x56xi32>
    %4 = arith.extui %3 : vector<64x56xi1> to vector<64x56xi32>
    %5 = arith.sitofp %4 : vector<64x56xi32> to vector<64x56xf32>
    %c0_1 = arith.constant 0 : index
    %c0_2 = arith.constant 0 : index
    %6 = vector.load %arg1[%c0_1, %c0_2] : memref<56x32xf32, #tpu.memory_space<vmem>>, vector<56x32xf32>
    %cst = arith.constant dense<0.000000e+00> : vector<64x32xf32>
    %7 = tpu.matmul %5, %6, %cst {dimension_numbers = #tpu.dot_dimension_numbers<[1], [0], [0], [1], [0, 0, 1, 1], [], []>} : vector<64x56xf32>, vector<56x32xf32>, vector<64x32xf32> -> vector<64x32xf32>
    %c0_3 = arith.constant 0 : index
    %c0_4 = arith.constant 0 : index
    %8 = vector.load %arg2[%c0_3, %c0_4] : memref<32x64xf32, #tpu.memory_space<vmem>>, vector<32x64xf32>
    %cst_5 = arith.constant dense<0.000000e+00> : vector<64x64xf32>
    %9 = tpu.matmul %7, %8, %cst_5 {dimension_numbers = #tpu.dot_dimension_numbers<[1], [0], [0], [1], [0, 0, 1, 1], [], []>} : vector<64x32xf32>, vector<32x64xf32>, vector<64x64xf32> -> vector<64x64xf32>
    %10 = vector.extract_strided_slice %9 {offsets = [0, 0], sizes = [64, 32], strides = [1, 1]} : vector<64x64xf32> to vector<64x32xf32>
    %11 = vector.extract_strided_slice %9 {offsets = [0, 32], sizes = [64, 32], strides = [1, 1]} : vector<64x64xf32> to vector<64x32xf32>
    %12 = vector.extract_strided_slice %11 {offsets = [1, 0], sizes = [63, 32], strides = [1, 1]} : vector<64x32xf32> to vector<63x32xf32>
    %cst_6 = arith.constant 0.000000e+00 : f32
    %13 = vector.broadcast %cst_6 : f32 to vector<1x32xf32>
    %14 = tpu.concatenate %12, %13 in 0 : vector<63x32xf32>, vector<1x32xf32> -> vector<64x32xf32>
    %15 = arith.addf %10, %14 : vector<64x32xf32>
    %c0_7 = arith.constant 0 : index
    %c0_8 = arith.constant 0 : index
    %16 = vector.load %arg3[%c0_7, %c0_8] : memref<1x32xf32, #tpu.memory_space<vmem>>, vector<1x32xf32>
    %17 = vector.broadcast %16 : vector<1x32xf32> to vector<64x32xf32>
    %18 = arith.addf %15, %17 : vector<64x32xf32>
    %cst_9 = arith.constant 0.000000e+00 : f32
    %19 = vector.broadcast %cst_9 : f32 to vector<64x32xf32>
    %20 = arith.maximumf %18, %19 : vector<64x32xf32>
    %21 = vector.shape_cast %20 : vector<64x32xf32> to vector<8x8x32xf32>
    %22 = tpu.iota {dimensions = array<i32: 1>} : vector<8x8x32xi32>
    %c7_i32 = arith.constant 7 : i32
    %23 = vector.broadcast %c7_i32 : i32 to vector<8x8x32xi32>
    %24 = arith.cmpi ne, %22, %23 : vector<8x8x32xi32>
    %cst_10 = arith.constant 0.000000e+00 : f32
    %25 = vector.broadcast %cst_10 : f32 to vector<8x8x32xf32>
    %26 = arith.select %24, %21, %25 : vector<8x8x32xi1>, vector<8x8x32xf32>
    %cst_11 = arith.constant dense<0xFF800000> : vector<8x32xf32>
    %27 = vector.multi_reduction <maximumf>, %26, %cst_11 [1] : vector<8x8x32xf32> to vector<8x32xf32>
    %c0_12 = arith.constant 0 : index
    %c0_13 = arith.constant 0 : index
    %28 = vector.load %arg4[%c0_12, %c0_13] : memref<32x128xf32, #tpu.memory_space<vmem>>, vector<32x128xf32>
    %cst_14 = arith.constant dense<0.000000e+00> : vector<8x128xf32>
    %29 = tpu.matmul %27, %28, %cst_14 {dimension_numbers = #tpu.dot_dimension_numbers<[1], [0], [0], [1], [0, 0, 1, 1], [], []>} : vector<8x32xf32>, vector<32x128xf32>, vector<8x128xf32> -> vector<8x128xf32>
    %c0_15 = arith.constant 0 : index
    %c0_16 = arith.constant 0 : index
    %30 = vector.load %arg5[%c0_15, %c0_16] : memref<1x128xf32, #tpu.memory_space<vmem>>, vector<1x128xf32>
    %31 = vector.broadcast %30 : vector<1x128xf32> to vector<8x128xf32>
    %32 = arith.addf %29, %31 : vector<8x128xf32>
    %c0_17 = arith.constant 0 : index
    %c0_18 = arith.constant 0 : index
    %33 = vector.load %arg6[%c0_17, %c0_18] : memref<8x128xf32, #tpu.memory_space<vmem>>, vector<8x128xf32>
    tpu.vector_store %arg6[%c0_17, %c0_18], %32 {strides = array<i32>} : memref<8x128xf32, #tpu.memory_space<vmem>>, vector<8x128xf32>,
    return
  }
}

</mosaic_0001>

<llo_original>
// kernel: _cnn_forward.1
$region0: #{_cnn_forward.1}
  #allocation0 [shape = 'u32[]', space=smem, size = 0x4, offset = 0x4, fixed_abs, tag = 'smem constant byte address 0x4 - core index']
  #allocation1 [shape = 'u32[72,128]{1,0:T(1,128)}', space=vmem, size = 0x9000, scoped, tag = 'internal scratch']
  %s0 = inlined_call_operand.vmem [shape: s32[64,1], index: 0, kind: input, shape index: {}]
  %s1 = inlined_call_operand.vmem [shape: f32[56,32], index: 1, kind: input, shape index: {}]
  %s2 = inlined_call_operand.vmem [shape: f32[32,64], index: 2, kind: input, shape index: {}]
  %s3 = inlined_call_operand.vmem [shape: f32[1,32], index: 3, kind: input, shape index: {}]
  %s4 = inlined_call_operand.vmem [shape: f32[32,128], index: 4, kind: input, shape index: {}]
  %s5 = inlined_call_operand.vmem [shape: f32[1,128], index: 5, kind: input, shape index: {}]
  %s6 = inlined_call_operand.vmem [shape: f32[8,128], index: 6, kind: output, shape index: {}]
  %s7 = sld [smem:[#allocation0]]
  $region34: #{_cnn_forward.1} parent=0
    _
  %s9 = ssub.s32 1, %s7
  %s10 = scalar_select 0, %s9, %s7
  // Predicated region
  $region2: #{_cnn_forward.1} parent=0 // pred_check
    _
  $region3: #{_cnn_forward.1} parent=0 // pred_check_branch
    %12 = sbr.rel (0) target = $region5
  $region4: #{_cnn_forward.1} parent=0 // pred_region
    _
  $region5: #{_cnn_forward.1} parent=0 // pred_fallthru
    _
  // Predicated region
  $region6: #{_cnn_forward.1} parent=0 // pred_check
    _
  $region7: #{_cnn_forward.1} parent=0 // pred_check_branch
    %14 = sbr.rel (0) target = $region9
  $region8: #{_cnn_forward.1} parent=0 // pred_region
    _
  $region9: #{_cnn_forward.1} parent=0 // pred_fallthru
    _
  // Predicated region
  $region10: #{_cnn_forward.1} parent=0 // pred_check
    _
  $region11: #{_cnn_forward.1} parent=0 // pred_check_branch
    %16 = sbr.rel (0) target = $region13
  $region12: #{_cnn_forward.1} parent=0 // pred_region
    _
  $region13: #{_cnn_forward.1} parent=0 // pred_fallthru
    _
  // Predicated region
  $region14: #{_cnn_forward.1} parent=0 // pred_check
    _
  $region15: #{_cnn_forward.1} parent=0 // pred_check_branch
    %18 = sbr.rel (0) target = $region17
  $region16: #{_cnn_forward.1} parent=0 // pred_region
    _
  $region17: #{_cnn_forward.1} parent=0 // pred_fallthru
    _
  // Predicated region
  $region18: #{_cnn_forward.1} parent=0 // pred_check
    _
  $region19: #{_cnn_forward.1} parent=0 // pred_check_branch
    %20 = sbr.rel (0) target = $region21
  $region20: #{_cnn_forward.1} parent=0 // pred_region
    _
  $region21: #{_cnn_forward.1} parent=0 // pred_fallthru
    _
  // Predicated region
  $region22: #{_cnn_forward.1} parent=0 // pred_check
    _
  $region23: #{_cnn_forward.1} parent=0 // pred_check_branch
    %22 = sbr.rel (0) target = $region25
  $region24: #{_cnn_forward.1} parent=0 // pred_region
    _
  $region25: #{_cnn_forward.1} parent=0 // pred_fallthru
    _
  %v23 = vld [vmem:[%s0] sm:$0xff]
  %v24 = vld [vmem:[%s0 + $0x8] sm:$0xff]
  %v25 = vld [vmem:[%s0 + $0x10] sm:$0xff]
  %v26 = vld [vmem:[%s0 + $0x18] sm:$0xff]
  %v27 = vld [vmem:[%s0 + $0x20] sm:$0xff]
  %v28 = vld [vmem:[%s0 + $0x28] sm:$0xff]
  %v29 = vld [vmem:[%s0 + $0x30] sm:$0xff]
  %v30 = vld [vmem:[%s0 + $0x38] sm:$0xff]
  %v31 = vlaneseq
  %v32 = vand.u32 %v31, 127
  %33 = vset.pattern.permute.xlu0 0
  %34 = vperm.xlu0 %33, %v23
  %v35 = vpop.permute.xlu0 %34
  %36 = vset.pattern.permute.xlu0 0
  %37 = vperm.xlu0 %36, %v24
  %v38 = vpop.permute.xlu0 %37
  %39 = vset.pattern.permute.xlu0 0
  %40 = vperm.xlu0 %39, %v25
  %v41 = vpop.permute.xlu0 %40
  %42 = vset.pattern.permute.xlu0 0
  %43 = vperm.xlu0 %42, %v26
  %v44 = vpop.permute.xlu0 %43
  %45 = vset.pattern.permute.xlu0 0
  %46 = vperm.xlu0 %45, %v27
  %v47 = vpop.permute.xlu0 %46
  %48 = vset.pattern.permute.xlu0 0
  %49 = vperm.xlu0 %48, %v28
  %v50 = vpop.permute.xlu0 %49
  %51 = vset.pattern.permute.xlu0 0
  %52 = vperm.xlu0 %51, %v29
  %v53 = vpop.permute.xlu0 %52
  %54 = vset.pattern.permute.xlu0 0
  %55 = vperm.xlu0 %54, %v30
  %v56 = vpop.permute.xlu0 %55
  %vm57 = vcmp.eq.s32.totalorder %v32, %v35
  %vm58 = vcmp.eq.s32.totalorder %v32, %v38
  %vm59 = vcmp.eq.s32.totalorder %v32, %v41
  %vm60 = vcmp.eq.s32.totalorder %v32, %v44
  %vm61 = vcmp.eq.s32.totalorder %v32, %v47
  %vm62 = vcmp.eq.s32.totalorder %v32, %v50
  %vm63 = vcmp.eq.s32.totalorder %v32, %v53
  %vm64 = vcmp.eq.s32.totalorder %v32, %v56
  %v65 = vsel %vm57, 1, 0
  %v66 = vsel %vm58, 1, 0
  %v67 = vsel %vm59, 1, 0
  %v68 = vsel %vm60, 1, 0
  %v69 = vsel %vm61, 1, 0
  %v70 = vsel %vm62, 1, 0
  %v71 = vsel %vm63, 1, 0
  %v72 = vsel %vm64, 1, 0
  %v73 = vcvt.s32.f32 %v65
  %v74 = vcvt.s32.f32 %v66
  %v75 = vcvt.s32.f32 %v67
  %v76 = vcvt.s32.f32 %v68
  %v77 = vcvt.s32.f32 %v69
  %v78 = vcvt.s32.f32 %v70
  %v79 = vcvt.s32.f32 %v71
  %v80 = vcvt.s32.f32 %v72
  %v81 = vld [vmem:[%s1] sm:$0xff]
  %v82 = vld [vmem:[%s1 + $0x8] sm:$0xff]
  %v83 = vld [vmem:[%s1 + $0x10] sm:$0xff]
  %v84 = vld [vmem:[%s1 + $0x18] sm:$0xff]
  %v85 = vld [vmem:[%s1 + $0x20] sm:$0xff]
  %v86 = vld [vmem:[%s1 + $0x28] sm:$0xff]
  %v87 = vld [vmem:[%s1 + $0x30] sm:$0xff]
  %vm88 = vcmask 457728
  %v90 = vsel %vm88, %v73, 0
  %v93 = vsel %vm88, %v74, 0
  %v96 = vsel %vm88, %v75, 0
  %v99 = vsel %vm88, %v76, 0
  %v102 = vsel %vm88, %v77, 0
  %v105 = vsel %vm88, %v78, 0
  %v108 = vsel %vm88, %v79, 0
  %v111 = vsel %vm88, %v80, 0
  %113 = vmatpush.msra.mxu0 0.0
  %114 = vmatpush.msra.mxu0 0.0
  %115 = vmatpush.msra.mxu0 0.0
  %116 = vmatpush.msra.mxu0 0.0
  %117 = vmatpush.msra.mxu0 0.0
  %118 = vmatpush.msra.mxu0 0.0
  %119 = vmatpush.msra.mxu0 0.0
  %120 = vmatpush.msra.mxu0 0.0
  %121 = vmatpush.msra.mxu0 0.0
  %122 = vmatpush.msra.mxu0 %v87
  %123 = vmatpush.msra.mxu0 %v86
  %124 = vmatpush.msra.mxu0 %v85
  %125 = vmatpush.msra.mxu0 %v84
  %126 = vmatpush.msra.mxu0 %v83
  %127 = vmatpush.msra.mxu0 %v82
  %128 = vmatpush.msra.mxu0 %v81
  %129 = vmatmul.f32.gmra.mxu0 %v90
  %v130 = vpop.f32.mrf.mxu0
  %v131 = vadd.f32 0.0, %v130
  %132 = vmatmul.f32.gmra.mxu0 %v93
  %v133 = vpop.f32.mrf.mxu0
  %v134 = vadd.f32 0.0, %v133
  %135 = vmatmul.f32.gmra.mxu0 %v96
  %v136 = vpop.f32.mrf.mxu0
  %v137 = vadd.f32 0.0, %v136
  %138 = vmatmul.f32.gmra.mxu0 %v99
  %v139 = vpop.f32.mrf.mxu0
  %v140 = vadd.f32 0.0, %v139
  %141 = vmatmul.f32.gmra.mxu0 %v102
  %v142 = vpop.f32.mrf.mxu0
  %v143 = vadd.f32 0.0, %v142
  %144 = vmatmul.f32.gmra.mxu0 %v105
  %v145 = vpop.f32.mrf.mxu0
  %v146 = vadd.f32 0.0, %v145
  %147 = vmatmul.f32.gmra.mxu0 %v108
  %v148 = vpop.f32.mrf.mxu0
  %v149 = vadd.f32 0.0, %v148
  %150 = vmatmul.f32.gmra.mxu0 %v111
  %v151 = vpop.f32.mrf.mxu0
  %v152 = vadd.f32 0.0, %v151
  %153 = vdwg.mxu0
  %v154 = vld [vmem:[%s2] sm:$0xff]
  %v155 = vld [vmem:[%s2 + $0x8] sm:$0xff]
  %v156 = vld [vmem:[%s2 + $0x10] sm:$0xff]
  %v157 = vld [vmem:[%s2 + $0x18] sm:$0xff]
  %vm158 = vcmask 261120
  %v160 = vsel %vm158, %v131, 0
  %v163 = vsel %vm158, %v134, 0
  %v166 = vsel %vm158, %v137, 0
  %v169 = vsel %vm158, %v140, 0
  %v172 = vsel %vm158, %v143, 0
  %v175 = vsel %vm158, %v146, 0
  %v178 = vsel %vm158, %v149, 0
  %v181 = vsel %vm158, %v152, 0
  %183 = vmatpush.msra.mxu0 0.0
  %184 = vmatpush.msra.mxu0 0.0
  %185 = vmatpush.msra.mxu0 0.0
  %186 = vmatpush.msra.mxu0 0.0
  %187 = vmatpush.msra.mxu0 0.0
  %188 = vmatpush.msra.mxu0 0.0
  %189 = vmatpush.msra.mxu0 0.0
  %190 = vmatpush.msra.mxu0 0.0
  %191 = vmatpush.msra.mxu0 0.0
  %192 = vmatpush.msra.mxu0 0.0
  %193 = vmatpush.msra.mxu0 0.0
  %194 = vmatpush.msra.mxu0 0.0
  %195 = vmatpush.msra.mxu0 %v157
  %196 = vmatpush.msra.mxu0 %v156
  %197 = vmatpush.msra.mxu0 %v155
  %198 = vmatpush.msra.mxu0 %v154
  %199 = vmatmul.f32.gmra.mxu0 %v160
  %v200 = vpop.f32.mrf.mxu0
  %v201 = vadd.f32 0.0, %v200
  %202 = vmatmul.f32.gmra.mxu0 %v163
  %v203 = vpop.f32.mrf.mxu0
  %v204 = vadd.f32 0.0, %v203
  %205 = vmatmul.f32.gmra.mxu0 %v166
  %v206 = vpop.f32.mrf.mxu0
  %v207 = vadd.f32 0.0, %v206
  %208 = vmatmul.f32.gmra.mxu0 %v169
  %v209 = vpop.f32.mrf.mxu0
  %v210 = vadd.f32 0.0, %v209
  %211 = vmatmul.f32.gmra.mxu0 %v172
  %v212 = vpop.f32.mrf.mxu0
  %v213 = vadd.f32 0.0, %v212
  %214 = vmatmul.f32.gmra.mxu0 %v175
  %v215 = vpop.f32.mrf.mxu0
  %v216 = vadd.f32 0.0, %v215
  %217 = vmatmul.f32.gmra.mxu0 %v178
  %v218 = vpop.f32.mrf.mxu0
  %v219 = vadd.f32 0.0, %v218
  %220 = vmatmul.f32.gmra.mxu0 %v181
  %v221 = vpop.f32.mrf.mxu0
  %v222 = vadd.f32 0.0, %v221
  %223 = vdwg.mxu0
  %vm232 = vcmask 1046528
  %v233 = vrot.slane %v201, 1
  %v234 = vrot.slane %v204, 1
  %v235 = vsel %vm232, %v233, %v234
  %v236 = vrot.slane %v207, 1
  %v237 = vsel %vm232, %v234, %v236
  %v238 = vrot.slane %v210, 1
  %v239 = vsel %vm232, %v236, %v238
  %v240 = vrot.slane %v213, 1
  %v241 = vsel %vm232, %v238, %v240
  %v242 = vrot.slane %v216, 1
  %v243 = vsel %vm232, %v240, %v242
  %v244 = vrot.slane %v219, 1
  %v245 = vsel %vm232, %v242, %v244
  %v246 = vrot.slane %v222, 1
  %v247 = vsel %vm232, %v244, %v246
  %v249 = vsel %vm232, %v246, 0.0
  %251 = vrot.lane.b32.xlu0 %v235, 96
  %v252 = vpop.permute.xlu0 %251
  %253 = vrot.lane.b32.xlu0 %v237, 96
  %v254 = vpop.permute.xlu0 %253
  %255 = vrot.lane.b32.xlu0 %v239, 96
  %v256 = vpop.permute.xlu0 %255
  %257 = vrot.lane.b32.xlu0 %v241, 96
  %v258 = vpop.permute.xlu0 %257
  %259 = vrot.lane.b32.xlu0 %v243, 96
  %v260 = vpop.permute.xlu0 %259
  %261 = vrot.lane.b32.xlu0 %v245, 96
  %v262 = vpop.permute.xlu0 %261
  %263 = vrot.lane.b32.xlu0 %v247, 96
  %v264 = vpop.permute.xlu0 %263
  %265 = vrot.lane.b32.xlu0 %v249, 96
  %v266 = vpop.permute.xlu0 %265
  %v275 = vadd.f32 %v201, %v252
  %v276 = vadd.f32 %v204, %v254
  %v277 = vadd.f32 %v207, %v256
  %v278 = vadd.f32 %v210, %v258
  %v279 = vadd.f32 %v213, %v260
  %v280 = vadd.f32 %v216, %v262
  %v281 = vadd.f32 %v219, %v264
  %v282 = vadd.f32 %v222, %v266
  %v283 = vld [vmem:[%s3] sm:$0x1]
  %v285 = vperm.slane %v283, 0
  %v287 = vadd.f32 %v275, %v285
  %v288 = vadd.f32 %v276, %v285
  %v289 = vadd.f32 %v277, %v285
  %v290 = vadd.f32 %v278, %v285
  %v291 = vadd.f32 %v279, %v285
  %v292 = vadd.f32 %v280, %v285
  %v293 = vadd.f32 %v281, %v285
  %v294 = vadd.f32 %v282, %v285
  %v295 = vmax.f32 %v287, 0.0
  %v296 = vmax.f32 %v288, 0.0
  %v297 = vmax.f32 %v289, 0.0
  %v298 = vmax.f32 %v290, 0.0
  %v299 = vmax.f32 %v291, 0.0
  %v300 = vmax.f32 %v292, 0.0
  %v301 = vmax.f32 %v293, 0.0
  %v302 = vmax.f32 %v294, 0.0
  %v303 = vlaneseq
  %v304 = vshrl.u32 %v303, 7
  %vm305 = vcmp.ne.s32.totalorder %v304, 7
  %v306 = vsel %vm305, %v295, 0.0
  %v307 = vsel %vm305, %v296, 0.0
  %v308 = vsel %vm305, %v297, 0.0
  %v309 = vsel %vm305, %v298, 0.0
  %v310 = vsel %vm305, %v299, 0.0
  %v311 = vsel %vm305, %v300, 0.0
  %v312 = vsel %vm305, %v301, 0.0
  %v313 = vsel %vm305, %v302, 0.0
  %v314 = vsel %vm158, %v306, -inf
  %v315 = vrot.slane %v314, 4
  %v316 = vmax.f32 %v314, %v315
  %v317 = vrot.slane %v316, 2
  %v318 = vmax.f32 %v316, %v317
  %v319 = vrot.slane %v318, 1
  %v320 = vmax.f32 %v318, %v319
  %v321 = vsel %vm158, %v307, -inf
  %v322 = vrot.slane %v321, 4
  %v323 = vmax.f32 %v321, %v322
  %v324 = vrot.slane %v323, 2
  %v325 = vmax.f32 %v323, %v324
  %v326 = vrot.slane %v325, 1
  %v327 = vmax.f32 %v325, %v326
  %v328 = vsel %vm158, %v308, -inf
  %v329 = vrot.slane %v328, 4
  %v330 = vmax.f32 %v328, %v329
  %v331 = vrot.slane %v330, 2
  %v332 = vmax.f32 %v330, %v331
  %v333 = vrot.slane %v332, 1
  %v334 = vmax.f32 %v332, %v333
  %v335 = vsel %vm158, %v309, -inf
  %v336 = vrot.slane %v335, 4
  %v337 = vmax.f32 %v335, %v336
  %v338 = vrot.slane %v337, 2
  %v339 = vmax.f32 %v337, %v338
  %v340 = vrot.slane %v339, 1
  %v341 = vmax.f32 %v339, %v340
  %v342 = vsel %vm158, %v310, -inf
  %v343 = vrot.slane %v342, 4
  %v344 = vmax.f32 %v342, %v343
  %v345 = vrot.slane %v344, 2
  %v346 = vmax.f32 %v344, %v345
  %v347 = vrot.slane %v346, 1
  %v348 = vmax.f32 %v346, %v347
  %v349 = vsel %vm158, %v311, -inf
  %v350 = vrot.slane %v349, 4
  %v351 = vmax.f32 %v349, %v350
  %v352 = vrot.slane %v351, 2
  %v353 = vmax.f32 %v351, %v352
  %v354 = vrot.slane %v353, 1
  %v355 = vmax.f32 %v353, %v354
  %v356 = vsel %vm158, %v312, -inf
  %v357 = vrot.slane %v356, 4
  %v358 = vmax.f32 %v356, %v357
  %v359 = vrot.slane %v358, 2
  %v360 = vmax.f32 %v358, %v359
  %v361 = vrot.slane %v360, 1
  %v362 = vmax.f32 %v360, %v361
  %v363 = vsel %vm158, %v313, -inf
  %v364 = vrot.slane %v363, 4
  %v365 = vmax.f32 %v363, %v364
  %v366 = vrot.slane %v365, 2
  %v367 = vmax.f32 %v365, %v366
  %v368 = vrot.slane %v367, 1
  %v369 = vmax.f32 %v367, %v368
  %v370 = vld [vmem:[%s4] sm:$0xff]
  %v371 = vld [vmem:[%s4 + $0x8] sm:$0xff]
  %v372 = vld [vmem:[%s4 + $0x10] sm:$0xff]
  %v373 = vld [vmem:[%s4 + $0x18] sm:$0xff]
  %v374 = vld [vmem:[%s5] sm:$0x1]
  %v376 = vperm.slane %v374, 0
  %vm386 = vcmask 1041409
  %v387 = vsel %vm386, %v327, %v320
  %vm388 = vcmask 1042434
  %v389 = vsel %vm388, %v334, %v387
  %vm390 = vcmask 1043459
  %v391 = vsel %vm390, %v341, %v389
  %vm392 = vcmask 1044484
  %v393 = vsel %vm392, %v348, %v391
  %vm394 = vcmask 1045509
  %v395 = vsel %vm394, %v355, %v393
  %vm396 = vcmask 1046534
  %v397 = vsel %vm396, %v362, %v395
  %vm398 = vcmask 1047559
  %v399 = vsel %vm398, %v369, %v397
  %v400 = vsel %vm158, %v399, 0
  %402 = vmatpush.msra.mxu0 0.0
  %403 = vmatpush.msra.mxu0 0.0
  %404 = vmatpush.msra.mxu0 0.0
  %405 = vmatpush.msra.mxu0 0.0
  %406 = vmatpush.msra.mxu0 0.0
  %407 = vmatpush.msra.mxu0 0.0
  %408 = vmatpush.msra.mxu0 0.0
  %409 = vmatpush.msra.mxu0 0.0
  %410 = vmatpush.msra.mxu0 0.0
  %411 = vmatpush.msra.mxu0 0.0
  %412 = vmatpush.msra.mxu0 0.0
  %413 = vmatpush.msra.mxu0 0.0
  %414 = vmatpush.msra.mxu0 %v373
  %415 = vmatpush.msra.mxu0 %v372
  %416 = vmatpush.msra.mxu0 %v371
  %417 = vmatpush.msra.mxu0 %v370
  %418 = vmatmul.f32.gmra.mxu0 %v400
  %v419 = vpop.f32.mrf.mxu0
  %v420 = vadd.f32 %v376, %v419
  %421 = vdwg.mxu0
  %422 = vst [vmem:[%s6] sm:$0xff] %v420
  // Predicated region
  $region26: #{_cnn_forward.1} parent=0 // pred_check
    _
  $region27: #{_cnn_forward.1} parent=0 // pred_check_branch
    %424 = sbr.rel (0) target = $region29
  $region28: #{_cnn_forward.1} parent=0 // pred_region
    _
  $region29: #{_cnn_forward.1} parent=0 // pred_fallthru
    _
  // Predicated region
  $region30: #{_cnn_forward.1} parent=0 // pred_check
    _
  $region31: #{_cnn_forward.1} parent=0 // pred_check_branch
    %426 = sbr.rel (0) target = $region33
  $region32: #{_cnn_forward.1} parent=0 // pred_region
    _
  $region33: #{_cnn_forward.1} parent=0 // pred_fallthru
    _

</llo_original>
